<compile_context>
chip_gen: v7x
topology: tpu7x:2x2x1
jax: 0.10.0
libtpu: 0.0.40
codegen_flags: <defaults>
</compile_context>

<pallas_src>
import functools

import jax
import jax.numpy as jnp
from jax.experimental import pallas as pl
from jax.experimental.pallas import tpu as pltpu

_LANE = 128
_TARGET_BLOCK_BYTES = 4 << 20      # ~4 MiB per buffer -> 2x(in+out) double-buffered = 16 MiB
_VMEM_LIMIT_BYTES = 32 << 20       # explicit scoped-VMEM budget; safe on v5e/v6e/v7x
_MIN_PALLAS_ELEMS = 32 * 1024      # below this, pure JAX beats a Pallas dispatch


def _num_tensorcores() -> int:
    """Best-effort TensorCores-per-chip (v7x=2, v5e/v6e=1). Safe fallback: 1."""
    try:
        info = pltpu.get_tpu_info()
        for name in ("num_cores", "num_tensorcores", "tensorcore_count", "cores_per_chip"):
            n = getattr(info, name, None)
            if isinstance(n, int) and n > 0:
                return n
    except Exception:
        pass
    try:
        n = getattr(jax.devices()[0], "num_cores", None)
        if isinstance(n, int) and n > 0:
            return n
    except Exception:
        pass
    return 1


def _weight_quant_kernel(x_ref, o_ref, *, lo, hi, m_up, m_down):
    """Elementwise DoReFa weight quantization on one (block_rows, 128) VMEM tile."""
    x = x_ref[...].astype(jnp.float32)
    w = jnp.clip(x, lo, hi)
    # floor(w * 2**wf_bit) * 2**-wf_bit  ==  (floor((w/2**wi)*2**w_bit)/2**w_bit)*2**wi
    # (exact: every factor is a power of two)
    q = jnp.floor(w * m_up) * m_down
    o_ref[...] = q.astype(o_ref.dtype)


def weight_quantize_fn(x: jax.Array, w_bit: int, wf_bit: int, *,
                       min_pallas_elems: int = _MIN_PALLAS_ELEMS,
                       donate_input: bool = False) -> jax.Array:
    """JAX/Pallas equivalent of the PyTorch weight_quantize_fn.forward."""
    assert w_bit <= 16 or w_bit == 32
    if w_bit == 32:
        return x  # identity path — no quantization at 32-bit precision

    wi_bit = w_bit - wf_bit
    lo = -float(2 ** wi_bit)
    hi = float(2 ** wi_bit) - 1.0 / float(2 ** wf_bit)
    m_up = float(2 ** wf_bit)           # == 2**w_bit / 2**wi_bit
    m_down = 1.0 / float(2 ** wf_bit)   # == 2**wi_bit / 2**w_bit

    orig_shape = x.shape
    orig_dtype = x.dtype
    n_elems = x.size

    # Small tensors: pad/reshape/dispatch overhead dominates — pure JAX wins.
    if n_elems < min_pallas_elems:
        w = jnp.clip(x.astype(jnp.float32), lo, hi)
        return (jnp.floor(w * m_up) * m_down).astype(orig_dtype)

    # ---- Pallas path: stream the native dtype through a lane-dense (rows, 128) slab ----
    flat = x.reshape(-1)
    pad = (-n_elems) % _LANE
    if pad:
        # TODO(synk): an in-kernel masked tail (manual DMA of the <128-elem remainder via
        # pl.ANY refs) would remove this extra full-tensor pad/slice round trip for
        # non-lane-aligned sizes; lane-aligned sizes (the common case) skip it entirely.
        flat = jnp.pad(flat, (0, pad))
    rows = flat.shape[0] // _LANE
    slab = flat.reshape(rows, _LANE)

    itemsize = jnp.dtype(orig_dtype).itemsize
    # Minimum sublane multiple for the block's second-to-last dim, by element width.
    sub = {4: 8, 2: 16, 1: 32}.get(itemsize, 8)
    # ~4 MiB per buffer, rounded down to a sublane multiple (8192 rows f32, 16384 bf16).
    max_rows = max(sub, (_TARGET_BLOCK_BYTES // (_LANE * itemsize)) // sub * sub)
    n_cores = min(_num_tensorcores(), 2)

    if rows > max_rows:
        block_rows = max_rows                       # big streaming blocks, partial last block masked
    elif n_cores >= 2 and rows >= 2 * sub:
        # Dual-TC chips (v7x): keep >= n_cores grid steps so both cores stream HBM.
        block_rows = pl.cdiv(pl.cdiv(rows, n_cores), sub) * sub
    else:
        # Single-TC chips (v5e/v6e): one block == full slab; splitting is pure overhead.
        block_rows = rows                           # block == full dim is always legal
    grid = (pl.cdiv(rows, block_rows),)

    kernel = functools.partial(_weight_quant_kernel,
                               lo=lo, hi=hi, m_up=m_up, m_down=m_down)

    # Elementwise, same shape/dtype: alias output onto the input slab's HBM buffer when
    # the caller allows it (input must be dead/donatable or XLA will insert a copy).
    io_aliases = {0: 0} if donate_input else {}

    cost = pl.CostEstimate(
        flops=5 * slab.size,                        # clip(2) + mul + floor + mul per element
        transcendentals=0,
        bytes_accessed=2 * slab.size * itemsize,    # one read + one write of the slab
    )

    out_slab = pl.pallas_call(
        kernel,
        out_shape=jax.ShapeDtypeStruct(slab.shape, orig_dtype),
        grid_spec=pltpu.PrefetchScalarGridSpec(
            num_scalar_prefetch=0,
            grid=grid,
            in_specs=[pl.BlockSpec((block_rows, _LANE), lambda i: (i, 0))],
            out_specs=pl.BlockSpec((block_rows, _LANE), lambda i: (i, 0)),
        ),
        compiler_params=pltpu.CompilerParams(
            dimension_semantics=("parallel",),
            vmem_limit_bytes=_VMEM_LIMIT_BYTES,
        ),
        cost_estimate=cost,
        input_output_aliases=io_aliases,
    )(slab)

    out = out_slab.reshape(-1)
    if pad:
        out = out[:n_elems]
    return out.reshape(orig_shape)


def _reference(x, w_bit, wf_bit):
    """Pure-JAX reference mirroring the PyTorch forward (computed in f32)."""
    if w_bit == 32:
        return x
    wi_bit = w_bit - wf_bit
    scale = 2.0 ** wi_bit
    hi = scale - 1.0 / (2.0 ** wf_bit)
    w = jnp.clip(x.astype(jnp.float32), -scale, hi) / scale
    n = 2.0 ** w_bit
    return (jnp.floor(w * n) / n) * scale


if __name__ == "__main__":
    key = jax.random.PRNGKey(0)
    w_bit, wf_bit = 8, 6   # wi_bit = 2

    # Conv-style weight (OIHW): 128*64*3*3 = 73728 elems -> Pallas path, lane-aligned.
    x_big = jax.random.normal(key, (128, 64, 3, 3), dtype=jnp.float32) * 2.0
    out = jax.block_until_ready(weight_quantize_fn(x_big, w_bit, wf_bit))
    ref = _reference(x_big, w_bit, wf_bit)
    assert out.shape == x_big.shape and out.dtype == x_big.dtype
    assert jnp.allclose(out, ref, atol=1e-6, rtol=0.0), "f32 Pallas path mismatch"

    # bf16 weights stream natively through the kernel (no wrapper up-cast); output stays bf16.
    x_bf16 = x_big.astype(jnp.bfloat16)
    out_bf16 = jax.block_until_ready(weight_quantize_fn(x_bf16, w_bit, wf_bit))
    ref_bf16 = _reference(x_bf16, w_bit, wf_bit).astype(jnp.bfloat16)
    assert out_bf16.dtype == jnp.bfloat16
    assert jnp.allclose(out_bf16.astype(jnp.float32), ref_bf16.astype(jnp.float32),
                        atol=2.0 ** (-wf_bit), rtol=0.0), "bf16 Pallas path mismatch"

    # Ragged (non-multiple-of-128) size exercises the pad branch of the Pallas path.
    x_rag = jax.random.normal(jax.random.PRNGKey(2), (63, 49), dtype=jnp.float32) * 2.0
    out_rag = jax.block_until_ready(
        weight_quantize_fn(x_rag, w_bit, wf_bit, min_pallas_elems=1024))
    assert jnp.allclose(out_rag, _reference(x_rag, w_bit, wf_bit), atol=1e-6, rtol=0.0)

    # Jitted call with HBM output aliasing (input slab is a temporary inside the jit).
    quant_alias = jax.jit(
        lambda t: weight_quantize_fn(t + 0.0, w_bit, wf_bit, donate_input=True))
    out_alias = jax.block_until_ready(quant_alias(x_big))
    assert jnp.allclose(out_alias, ref, atol=1e-6, rtol=0.0), "aliased path mismatch"

    # Tiny per-layer weight exercises the pure-JAX fallback.
    x_small = jax.random.normal(jax.random.PRNGKey(1), (8, 4, 3, 3), dtype=jnp.float32) * 2.0
    out_small = jax.block_until_ready(weight_quantize_fn(x_small, w_bit, wf_bit))
    assert jnp.allclose(out_small, _reference(x_small, w_bit, wf_bit), atol=1e-6, rtol=0.0)

    # 32-bit passthrough path.
    out32 = jax.block_until_ready(weight_quantize_fn(x_big, 32, 0))
    assert jnp.array_equal(out32, x_big)

    print("KERNEL_OK")
</pallas_src>

<mosaic_0001>
module attributes {stable_mosaic.version = 11 : i64} {
  func.func @_weight_quant_kernel(%arg0: i32, %arg1: memref<576x128xf32, #tpu.memory_space<vmem>>, %arg2: memref<576x128xf32, #tpu.memory_space<vmem>>) attributes {dimension_semantics = [#tpu.dimension_semantics<parallel>], iteration_bounds = array<i64: 1>, scalar_prefetch = 0 : i64, scratch_operands = 0 : i64, tpu.core_type = #tpu.core_type<tc>, window_params = [{transform_indices = @transform_0, window_bounds = array<i64: 576, 128>}, {transform_indices = @transform_1, window_bounds = array<i64: 576, 128>}]} {
    %c0 = arith.constant 0 : index
    %c0_0 = arith.constant 0 : index
    %0 = vector.load %arg1[%c0, %c0_0] : memref<576x128xf32, #tpu.memory_space<vmem>>, vector<576x128xf32>
    %cst = arith.constant -4.000000e+00 : f32
    %cst_1 = arith.constant 3.984375 : f32
    %1 = vector.broadcast %cst : f32 to vector<576x128xf32>
    %2 = arith.maximumf %1, %0 : vector<576x128xf32>
    %3 = vector.broadcast %cst_1 : f32 to vector<576x128xf32>
    %4 = arith.minimumf %3, %2 : vector<576x128xf32>
    %cst_2 = arith.constant 6.400000e+01 : f32
    %5 = vector.broadcast %cst_2 : f32 to vector<576x128xf32>
    %6 = arith.mulf %4, %5 : vector<576x128xf32>
    %7 = math.floor %6 : vector<576x128xf32>
    %cst_3 = arith.constant 1.562500e-02 : f32
    %8 = vector.broadcast %cst_3 : f32 to vector<576x128xf32>
    %9 = arith.mulf %7, %8 : vector<576x128xf32>
    %c0_4 = arith.constant 0 : index
    %c0_5 = arith.constant 0 : index
    %10 = vector.load %arg2[%c0_4, %c0_5] : memref<576x128xf32, #tpu.memory_space<vmem>>, vector<576x128xf32>
    tpu.vector_store %arg2[%c0_4, %c0_5], %9 {strides = array<i32>} : memref<576x128xf32, #tpu.memory_space<vmem>>, vector<576x128xf32>,
    return
  }
  func.func @transform_0(%arg0: i32) -> (i32, i32) {
    %c0_i32 = arith.constant 0 : i32
    %c0_i32_0 = arith.constant 0 : i32
    return %arg0, %c0_i32 : i32, i32
  }
  func.func @transform_1(%arg0: i32) -> (i32, i32) {
    %c0_i32 = arith.constant 0 : i32
    %c0_i32_0 = arith.constant 0 : i32
    return %arg0, %c0_i32 : i32, i32
  }
}

</mosaic_0001>

<llo_original>
// kernel: tpu_custom_call.1
$region0: #{tpu_custom_call.1}
  #allocation0 [shape = 'u32[]', space=smem, size = 0x4, offset = 0x4, fixed_abs, tag = 'smem constant byte address 0x4 - core index']
  #allocation1 [shape = 'u32[144,128]{1,0:T(1,128)}', space=vmem, size = 0x12000, scoped, tag = 'internal scratch']
  %s0 = inlined_call_operand.hbm [shape: f32[576,128], index: 0, kind: input, shape index: {}]
  %s1 = inlined_call_operand.hbm [shape: f32[576,128], index: 1, kind: output, shape index: {}]
  %s2 = sld [smem:[#allocation0]]
  $region18: #{tpu_custom_call.1} parent=0
    _
  %s4 = ssub.s32 1, %s2
  %s5 = scalar_select 0, %s4, %s2
  $region1: #{tpu_custom_call.1} parent=0
    #allocation2 [shape = 'u8[294912]{0}', space=vmem, size = 0x48000, scoped, tag = 'input window, operand 0, single buffered']
    #allocation3 [shape = 's32[1]{0}', space=sflag, size = 0x4, scoped, tag = 'scoped memory for tpu_custom_call.1']
    #allocation4 [shape = 's32[1]{0}', space=sflag, size = 0x4, scoped, tag = 'scoped memory for tpu_custom_call.1']
    #allocation5 [shape = 'u8[294912]{0}', space=vmem, size = 0x48000, scoped, tag = 'output window, operand 0, single buffered']
    %6 = vsyncpa [#allocation3], 0
    %7 = vsyncpa [#allocation4], 0
    // Predicated region
    $region2: #{tpu_custom_call.1} parent=1 // pred_check
      _
    $region3: #{tpu_custom_call.1} parent=1 // pred_check_branch
      %9 = sbr.rel (0) target = $region5
    $region4: #{tpu_custom_call.1} parent=1 // pred_region
      %s11 = ssub.s32 9216, 9216
      %12 = vsyncadd [#allocation3], %s11
      %s13 = sshll.u32 [#allocation2], 4
      %s14 = int_to_ptr.vmem [resolvable:$true] %s13
      %19 = dma.hbm_to_vmem [thread:$0]  %s0, 9216, %s14, [#allocation3], 128, 128, 8
    $region5: #{tpu_custom_call.1} parent=1 // pred_fallthru
      _
    // Predicated region
    $region6: #{tpu_custom_call.1} parent=1 // pred_check
      _
    $region7: #{tpu_custom_call.1} parent=1 // pred_check_branch
      %21 = sbr.rel (0) target = $region9
    $region8: #{tpu_custom_call.1} parent=1 // pred_region
      %22 = dma.done [#allocation3], 9216
    $region9: #{tpu_custom_call.1} parent=1 // pred_fallthru
      _
    %v23 = vld [vmem:[#allocation2] sm:$0xff]
    %v24 = vld [vmem:[#allocation2 + $0x8] sm:$0xff]
    %v25 = vld [vmem:[#allocation2 + $0x10] sm:$0xff]
    %v26 = vld [vmem:[#allocation2 + $0x18] sm:$0xff]
    %v27 = vld [vmem:[#allocation2 + $0x20] sm:$0xff]
    %v28 = vld [vmem:[#allocation2 + $0x28] sm:$0xff]
    %v29 = vld [vmem:[#allocation2 + $0x30] sm:$0xff]
    %v30 = vld [vmem:[#allocation2 + $0x38] sm:$0xff]
    %v31 = vld [vmem:[#allocation2 + $0x40] sm:$0xff]
    %v32 = vld [vmem:[#allocation2 + $0x48] sm:$0xff]
    %v33 = vld [vmem:[#allocation2 + $0x50] sm:$0xff]
    %v34 = vld [vmem:[#allocation2 + $0x58] sm:$0xff]
    %v35 = vld [vmem:[#allocation2 + $0x60] sm:$0xff]
    %v36 = vld [vmem:[#allocation2 + $0x68] sm:$0xff]
    %v37 = vld [vmem:[#allocation2 + $0x70] sm:$0xff]
    %v38 = vld [vmem:[#allocation2 + $0x78] sm:$0xff]
    %v39 = vld [vmem:[#allocation2 + $0x80] sm:$0xff]
    %v40 = vld [vmem:[#allocation2 + $0x88] sm:$0xff]
    %v41 = vld [vmem:[#allocation2 + $0x90] sm:$0xff]
    %v42 = vld [vmem:[#allocation2 + $0x98] sm:$0xff]
    %v43 = vld [vmem:[#allocation2 + $0xa0] sm:$0xff]
    %v44 = vld [vmem:[#allocation2 + $0xa8] sm:$0xff]
    %v45 = vld [vmem:[#allocation2 + $0xb0] sm:$0xff]
    %v46 = vld [vmem:[#allocation2 + $0xb8] sm:$0xff]
    %v47 = vld [vmem:[#allocation2 + $0xc0] sm:$0xff]
    %v48 = vld [vmem:[#allocation2 + $0xc8] sm:$0xff]
    %v49 = vld [vmem:[#allocation2 + $0xd0] sm:$0xff]
    %v50 = vld [vmem:[#allocation2 + $0xd8] sm:$0xff]
    %v51 = vld [vmem:[#allocation2 + $0xe0] sm:$0xff]
    %v52 = vld [vmem:[#allocation2 + $0xe8] sm:$0xff]
    %v53 = vld [vmem:[#allocation2 + $0xf0] sm:$0xff]
    %v54 = vld [vmem:[#allocation2 + $0xf8] sm:$0xff]
    %v55 = vld [vmem:[#allocation2 + $0x100] sm:$0xff]
    %v56 = vld [vmem:[#allocation2 + $0x108] sm:$0xff]
    %v57 = vld [vmem:[#allocation2 + $0x110] sm:$0xff]
    %v58 = vld [vmem:[#allocation2 + $0x118] sm:$0xff]
    %v59 = vld [vmem:[#allocation2 + $0x120] sm:$0xff]
    %v60 = vld [vmem:[#allocation2 + $0x128] sm:$0xff]
    %v61 = vld [vmem:[#allocation2 + $0x130] sm:$0xff]
    %v62 = vld [vmem:[#allocation2 + $0x138] sm:$0xff]
    %v63 = vld [vmem:[#allocation2 + $0x140] sm:$0xff]
    %v64 = vld [vmem:[#allocation2 + $0x148] sm:$0xff]
    %v65 = vld [vmem:[#allocation2 + $0x150] sm:$0xff]
    %v66 = vld [vmem:[#allocation2 + $0x158] sm:$0xff]
    %v67 = vld [vmem:[#allocation2 + $0x160] sm:$0xff]
    %v68 = vld [vmem:[#allocation2 + $0x168] sm:$0xff]
    %v69 = vld [vmem:[#allocation2 + $0x170] sm:$0xff]
    %v70 = vld [vmem:[#allocation2 + $0x178] sm:$0xff]
    %v71 = vld [vmem:[#allocation2 + $0x180] sm:$0xff]
    %v72 = vld [vmem:[#allocation2 + $0x188] sm:$0xff]
    %v73 = vld [vmem:[#allocation2 + $0x190] sm:$0xff]
    %v74 = vld [vmem:[#allocation2 + $0x198] sm:$0xff]
    %v75 = vld [vmem:[#allocation2 + $0x1a0] sm:$0xff]
    %v76 = vld [vmem:[#allocation2 + $0x1a8] sm:$0xff]
    %v77 = vld [vmem:[#allocation2 + $0x1b0] sm:$0xff]
    %v78 = vld [vmem:[#allocation2 + $0x1b8] sm:$0xff]
    %v79 = vld [vmem:[#allocation2 + $0x1c0] sm:$0xff]
    %v80 = vld [vmem:[#allocation2 + $0x1c8] sm:$0xff]
    %v81 = vld [vmem:[#allocation2 + $0x1d0] sm:$0xff]
    %v82 = vld [vmem:[#allocation2 + $0x1d8] sm:$0xff]
    %v83 = vld [vmem:[#allocation2 + $0x1e0] sm:$0xff]
    %v84 = vld [vmem:[#allocation2 + $0x1e8] sm:$0xff]
    %v85 = vld [vmem:[#allocation2 + $0x1f0] sm:$0xff]
    %v86 = vld [vmem:[#allocation2 + $0x1f8] sm:$0xff]
    %v87 = vld [vmem:[#allocation2 + $0x200] sm:$0xff]
    %v88 = vld [vmem:[#allocation2 + $0x208] sm:$0xff]
    %v89 = vld [vmem:[#allocation2 + $0x210] sm:$0xff]
    %v90 = vld [vmem:[#allocation2 + $0x218] sm:$0xff]
    %v91 = vld [vmem:[#allocation2 + $0x220] sm:$0xff]
    %v92 = vld [vmem:[#allocation2 + $0x228] sm:$0xff]
    %v93 = vld [vmem:[#allocation2 + $0x230] sm:$0xff]
    %v94 = vld [vmem:[#allocation2 + $0x238] sm:$0xff]
    %v95 = vmax.f32 %v23, -4.0
    %v96 = vmax.f32 %v24, -4.0
    %v97 = vmax.f32 %v25, -4.0
    %v98 = vmax.f32 %v26, -4.0
    %v99 = vmax.f32 %v27, -4.0
    %v100 = vmax.f32 %v28, -4.0
    %v101 = vmax.f32 %v29, -4.0
    %v102 = vmax.f32 %v30, -4.0
    %v103 = vmax.f32 %v31, -4.0
    %v104 = vmax.f32 %v32, -4.0
    %v105 = vmax.f32 %v33, -4.0
    %v106 = vmax.f32 %v34, -4.0
    %v107 = vmax.f32 %v35, -4.0
    %v108 = vmax.f32 %v36, -4.0
    %v109 = vmax.f32 %v37, -4.0
    %v110 = vmax.f32 %v38, -4.0
    %v111 = vmax.f32 %v39, -4.0
    %v112 = vmax.f32 %v40, -4.0
    %v113 = vmax.f32 %v41, -4.0
    %v114 = vmax.f32 %v42, -4.0
    %v115 = vmax.f32 %v43, -4.0
    %v116 = vmax.f32 %v44, -4.0
    %v117 = vmax.f32 %v45, -4.0
    %v118 = vmax.f32 %v46, -4.0
    %v119 = vmax.f32 %v47, -4.0
    %v120 = vmax.f32 %v48, -4.0
    %v121 = vmax.f32 %v49, -4.0
    %v122 = vmax.f32 %v50, -4.0
    %v123 = vmax.f32 %v51, -4.0
    %v124 = vmax.f32 %v52, -4.0
    %v125 = vmax.f32 %v53, -4.0
    %v126 = vmax.f32 %v54, -4.0
    %v127 = vmax.f32 %v55, -4.0
    %v128 = vmax.f32 %v56, -4.0
    %v129 = vmax.f32 %v57, -4.0
    %v130 = vmax.f32 %v58, -4.0
    %v131 = vmax.f32 %v59, -4.0
    %v132 = vmax.f32 %v60, -4.0
    %v133 = vmax.f32 %v61, -4.0
    %v134 = vmax.f32 %v62, -4.0
    %v135 = vmax.f32 %v63, -4.0
    %v136 = vmax.f32 %v64, -4.0
    %v137 = vmax.f32 %v65, -4.0
    %v138 = vmax.f32 %v66, -4.0
    %v139 = vmax.f32 %v67, -4.0
    %v140 = vmax.f32 %v68, -4.0
    %v141 = vmax.f32 %v69, -4.0
    %v142 = vmax.f32 %v70, -4.0
    %v143 = vmax.f32 %v71, -4.0
    %v144 = vmax.f32 %v72, -4.0
    %v145 = vmax.f32 %v73, -4.0
    %v146 = vmax.f32 %v74, -4.0
    %v147 = vmax.f32 %v75, -4.0
    %v148 = vmax.f32 %v76, -4.0
    %v149 = vmax.f32 %v77, -4.0
    %v150 = vmax.f32 %v78, -4.0
    %v151 = vmax.f32 %v79, -4.0
    %v152 = vmax.f32 %v80, -4.0
    %v153 = vmax.f32 %v81, -4.0
    %v154 = vmax.f32 %v82, -4.0
    %v155 = vmax.f32 %v83, -4.0
    %v156 = vmax.f32 %v84, -4.0
    %v157 = vmax.f32 %v85, -4.0
    %v158 = vmax.f32 %v86, -4.0
    %v159 = vmax.f32 %v87, -4.0
    %v160 = vmax.f32 %v88, -4.0
    %v161 = vmax.f32 %v89, -4.0
    %v162 = vmax.f32 %v90, -4.0
    %v163 = vmax.f32 %v91, -4.0
    %v164 = vmax.f32 %v92, -4.0
    %v165 = vmax.f32 %v93, -4.0
    %v166 = vmax.f32 %v94, -4.0
    %v167 = vmin.f32 %v95, 3.984375
    %v168 = vmin.f32 %v96, 3.984375
    %v169 = vmin.f32 %v97, 3.984375
    %v170 = vmin.f32 %v98, 3.984375
    %v171 = vmin.f32 %v99, 3.984375
    %v172 = vmin.f32 %v100, 3.984375
    %v173 = vmin.f32 %v101, 3.984375
    %v174 = vmin.f32 %v102, 3.984375
    %v175 = vmin.f32 %v103, 3.984375
    %v176 = vmin.f32 %v104, 3.984375
    %v177 = vmin.f32 %v105, 3.984375
    %v178 = vmin.f32 %v106, 3.984375
    %v179 = vmin.f32 %v107, 3.984375
    %v180 = vmin.f32 %v108, 3.984375
    %v181 = vmin.f32 %v109, 3.984375
    %v182 = vmin.f32 %v110, 3.984375
    %v183 = vmin.f32 %v111, 3.984375
    %v184 = vmin.f32 %v112, 3.984375
    %v185 = vmin.f32 %v113, 3.984375
    %v186 = vmin.f32 %v114, 3.984375
    %v187 = vmin.f32 %v115, 3.984375
    %v188 = vmin.f32 %v116, 3.984375
    %v189 = vmin.f32 %v117, 3.984375
    %v190 = vmin.f32 %v118, 3.984375
    %v191 = vmin.f32 %v119, 3.984375
    %v192 = vmin.f32 %v120, 3.984375
    %v193 = vmin.f32 %v121, 3.984375
    %v194 = vmin.f32 %v122, 3.984375
    %v195 = vmin.f32 %v123, 3.984375
    %v196 = vmin.f32 %v124, 3.984375
    %v197 = vmin.f32 %v125, 3.984375
    %v198 = vmin.f32 %v126, 3.984375
    %v199 = vmin.f32 %v127, 3.984375
    %v200 = vmin.f32 %v128, 3.984375
    %v201 = vmin.f32 %v129, 3.984375
    %v202 = vmin.f32 %v130, 3.984375
    %v203 = vmin.f32 %v131, 3.984375
    %v204 = vmin.f32 %v132, 3.984375
    %v205 = vmin.f32 %v133, 3.984375
    %v206 = vmin.f32 %v134, 3.984375
    %v207 = vmin.f32 %v135, 3.984375
    %v208 = vmin.f32 %v136, 3.984375
    %v209 = vmin.f32 %v137, 3.984375
    %v210 = vmin.f32 %v138, 3.984375
    %v211 = vmin.f32 %v139, 3.984375
    %v212 = vmin.f32 %v140, 3.984375
    %v213 = vmin.f32 %v141, 3.984375
    %v214 = vmin.f32 %v142, 3.984375
    %v215 = vmin.f32 %v143, 3.984375
    %v216 = vmin.f32 %v144, 3.984375
    %v217 = vmin.f32 %v145, 3.984375
    %v218 = vmin.f32 %v146, 3.984375
    %v219 = vmin.f32 %v147, 3.984375
    %v220 = vmin.f32 %v148, 3.984375
    %v221 = vmin.f32 %v149, 3.984375
    %v222 = vmin.f32 %v150, 3.984375
    %v223 = vmin.f32 %v151, 3.984375
    %v224 = vmin.f32 %v152, 3.984375
    %v225 = vmin.f32 %v153, 3.984375
    %v226 = vmin.f32 %v154, 3.984375
    %v227 = vmin.f32 %v155, 3.984375
    %v228 = vmin.f32 %v156, 3.984375
    %v229 = vmin.f32 %v157, 3.984375
    %v230 = vmin.f32 %v158, 3.984375
    %v231 = vmin.f32 %v159, 3.984375
    %v232 = vmin.f32 %v160, 3.984375
    %v233 = vmin.f32 %v161, 3.984375
    %v234 = vmin.f32 %v162, 3.984375
    %v235 = vmin.f32 %v163, 3.984375
    %v236 = vmin.f32 %v164, 3.984375
    %v237 = vmin.f32 %v165, 3.984375
    %v238 = vmin.f32 %v166, 3.984375
    %v239 = vmul.f32 %v167, 64.0
    %v240 = vmul.f32 %v168, 64.0
    %v241 = vmul.f32 %v169, 64.0
    %v242 = vmul.f32 %v170, 64.0
    %v243 = vmul.f32 %v171, 64.0
    %v244 = vmul.f32 %v172, 64.0
    %v245 = vmul.f32 %v173, 64.0
    %v246 = vmul.f32 %v174, 64.0
    %v247 = vmul.f32 %v175, 64.0
    %v248 = vmul.f32 %v176, 64.0
    %v249 = vmul.f32 %v177, 64.0
    %v250 = vmul.f32 %v178, 64.0
    %v251 = vmul.f32 %v179, 64.0
    %v252 = vmul.f32 %v180, 64.0
    %v253 = vmul.f32 %v181, 64.0
    %v254 = vmul.f32 %v182, 64.0
    %v255 = vmul.f32 %v183, 64.0
    %v256 = vmul.f32 %v184, 64.0
    %v257 = vmul.f32 %v185, 64.0
    %v258 = vmul.f32 %v186, 64.0
    %v259 = vmul.f32 %v187, 64.0
    %v260 = vmul.f32 %v188, 64.0
    %v261 = vmul.f32 %v189, 64.0
    %v262 = vmul.f32 %v190, 64.0
    %v263 = vmul.f32 %v191, 64.0
    %v264 = vmul.f32 %v192, 64.0
    %v265 = vmul.f32 %v193, 64.0
    %v266 = vmul.f32 %v194, 64.0
    %v267 = vmul.f32 %v195, 64.0
    %v268 = vmul.f32 %v196, 64.0
    %v269 = vmul.f32 %v197, 64.0
    %v270 = vmul.f32 %v198, 64.0
    %v271 = vmul.f32 %v199, 64.0
    %v272 = vmul.f32 %v200, 64.0
    %v273 = vmul.f32 %v201, 64.0
    %v274 = vmul.f32 %v202, 64.0
    %v275 = vmul.f32 %v203, 64.0
    %v276 = vmul.f32 %v204, 64.0
    %v277 = vmul.f32 %v205, 64.0
    %v278 = vmul.f32 %v206, 64.0
    %v279 = vmul.f32 %v207, 64.0
    %v280 = vmul.f32 %v208, 64.0
    %v281 = vmul.f32 %v209, 64.0
    %v282 = vmul.f32 %v210, 64.0
    %v283 = vmul.f32 %v211, 64.0
    %v284 = vmul.f32 %v212, 64.0
    %v285 = vmul.f32 %v213, 64.0
    %v286 = vmul.f32 %v214, 64.0
    %v287 = vmul.f32 %v215, 64.0
    %v288 = vmul.f32 %v216, 64.0
    %v289 = vmul.f32 %v217, 64.0
    %v290 = vmul.f32 %v218, 64.0
    %v291 = vmul.f32 %v219, 64.0
    %v292 = vmul.f32 %v220, 64.0
    %v293 = vmul.f32 %v221, 64.0
    %v294 = vmul.f32 %v222, 64.0
    %v295 = vmul.f32 %v223, 64.0
    %v296 = vmul.f32 %v224, 64.0
    %v297 = vmul.f32 %v225, 64.0
    %v298 = vmul.f32 %v226, 64.0
    %v299 = vmul.f32 %v227, 64.0
    %v300 = vmul.f32 %v228, 64.0
    %v301 = vmul.f32 %v229, 64.0
    %v302 = vmul.f32 %v230, 64.0
    %v303 = vmul.f32 %v231, 64.0
    %v304 = vmul.f32 %v232, 64.0
    %v305 = vmul.f32 %v233, 64.0
    %v306 = vmul.f32 %v234, 64.0
    %v307 = vmul.f32 %v235, 64.0
    %v308 = vmul.f32 %v236, 64.0
    %v309 = vmul.f32 %v237, 64.0
    %v310 = vmul.f32 %v238, 64.0
    %v311 = vfloor.f32 %v239
    %v312 = vfloor.f32 %v240
    %v313 = vfloor.f32 %v241
    %v314 = vfloor.f32 %v242
    %v315 = vfloor.f32 %v243
    %v316 = vfloor.f32 %v244
    %v317 = vfloor.f32 %v245
    %v318 = vfloor.f32 %v246
    %v319 = vfloor.f32 %v247
    %v320 = vfloor.f32 %v248
    %v321 = vfloor.f32 %v249
    %v322 = vfloor.f32 %v250
    %v323 = vfloor.f32 %v251
    %v324 = vfloor.f32 %v252
    %v325 = vfloor.f32 %v253
    %v326 = vfloor.f32 %v254
    %v327 = vfloor.f32 %v255
    %v328 = vfloor.f32 %v256
    %v329 = vfloor.f32 %v257
    %v330 = vfloor.f32 %v258
    %v331 = vfloor.f32 %v259
    %v332 = vfloor.f32 %v260
    %v333 = vfloor.f32 %v261
    %v334 = vfloor.f32 %v262
    %v335 = vfloor.f32 %v263
    %v336 = vfloor.f32 %v264
    %v337 = vfloor.f32 %v265
    %v338 = vfloor.f32 %v266
    %v339 = vfloor.f32 %v267
    %v340 = vfloor.f32 %v268
    %v341 = vfloor.f32 %v269
    %v342 = vfloor.f32 %v270
    %v343 = vfloor.f32 %v271
    %v344 = vfloor.f32 %v272
    %v345 = vfloor.f32 %v273
    %v346 = vfloor.f32 %v274
    %v347 = vfloor.f32 %v275
    %v348 = vfloor.f32 %v276
    %v349 = vfloor.f32 %v277
    %v350 = vfloor.f32 %v278
    %v351 = vfloor.f32 %v279
    %v352 = vfloor.f32 %v280
    %v353 = vfloor.f32 %v281
    %v354 = vfloor.f32 %v282
    %v355 = vfloor.f32 %v283
    %v356 = vfloor.f32 %v284
    %v357 = vfloor.f32 %v285
    %v358 = vfloor.f32 %v286
    %v359 = vfloor.f32 %v287
    %v360 = vfloor.f32 %v288
    %v361 = vfloor.f32 %v289
    %v362 = vfloor.f32 %v290
    %v363 = vfloor.f32 %v291
    %v364 = vfloor.f32 %v292
    %v365 = vfloor.f32 %v293
    %v366 = vfloor.f32 %v294
    %v367 = vfloor.f32 %v295
    %v368 = vfloor.f32 %v296
    %v369 = vfloor.f32 %v297
    %v370 = vfloor.f32 %v298
    %v371 = vfloor.f32 %v299
    %v372 = vfloor.f32 %v300
    %v373 = vfloor.f32 %v301
    %v374 = vfloor.f32 %v302
    %v375 = vfloor.f32 %v303
    %v376 = vfloor.f32 %v304
    %v377 = vfloor.f32 %v305
    %v378 = vfloor.f32 %v306
    %v379 = vfloor.f32 %v307
    %v380 = vfloor.f32 %v308
    %v381 = vfloor.f32 %v309
    %v382 = vfloor.f32 %v310
    %v383 = vmul.f32 %v311, 0.015625
    %v384 = vmul.f32 %v312, 0.015625
    %v385 = vmul.f32 %v313, 0.015625
    %v386 = vmul.f32 %v314, 0.015625
    %v387 = vmul.f32 %v315, 0.015625
    %v388 = vmul.f32 %v316, 0.015625
    %v389 = vmul.f32 %v317, 0.015625
    %v390 = vmul.f32 %v318, 0.015625
    %v391 = vmul.f32 %v319, 0.015625
    %v392 = vmul.f32 %v320, 0.015625
    %v393 = vmul.f32 %v321, 0.015625
    %v394 = vmul.f32 %v322, 0.015625
    %v395 = vmul.f32 %v323, 0.015625
    %v396 = vmul.f32 %v324, 0.015625
    %v397 = vmul.f32 %v325, 0.015625
    %v398 = vmul.f32 %v326, 0.015625
    %v399 = vmul.f32 %v327, 0.015625
    %v400 = vmul.f32 %v328, 0.015625
    %v401 = vmul.f32 %v329, 0.015625
    %v402 = vmul.f32 %v330, 0.015625
    %v403 = vmul.f32 %v331, 0.015625
    %v404 = vmul.f32 %v332, 0.015625
    %v405 = vmul.f32 %v333, 0.015625
    %v406 = vmul.f32 %v334, 0.015625
    %v407 = vmul.f32 %v335, 0.015625
    %v408 = vmul.f32 %v336, 0.015625
    %v409 = vmul.f32 %v337, 0.015625
    %v410 = vmul.f32 %v338, 0.015625
    %v411 = vmul.f32 %v339, 0.015625
    %v412 = vmul.f32 %v340, 0.015625
    %v413 = vmul.f32 %v341, 0.015625
    %v414 = vmul.f32 %v342, 0.015625
    %v415 = vmul.f32 %v343, 0.015625
    %v416 = vmul.f32 %v344, 0.015625
    %v417 = vmul.f32 %v345, 0.015625
    %v418 = vmul.f32 %v346, 0.015625
    %v419 = vmul.f32 %v347, 0.015625
    %v420 = vmul.f32 %v348, 0.015625
    %v421 = vmul.f32 %v349, 0.015625
    %v422 = vmul.f32 %v350, 0.015625
    %v423 = vmul.f32 %v351, 0.015625
    %v424 = vmul.f32 %v352, 0.015625
    %v425 = vmul.f32 %v353, 0.015625
    %v426 = vmul.f32 %v354, 0.015625
    %v427 = vmul.f32 %v355, 0.015625
    %v428 = vmul.f32 %v356, 0.015625
    %v429 = vmul.f32 %v357, 0.015625
    %v430 = vmul.f32 %v358, 0.015625
    %v431 = vmul.f32 %v359, 0.015625
    %v432 = vmul.f32 %v360, 0.015625
    %v433 = vmul.f32 %v361, 0.015625
    %v434 = vmul.f32 %v362, 0.015625
    %v435 = vmul.f32 %v363, 0.015625
    %v436 = vmul.f32 %v364, 0.015625
    %v437 = vmul.f32 %v365, 0.015625
    %v438 = vmul.f32 %v366, 0.015625
    %v439 = vmul.f32 %v367, 0.015625
    %v440 = vmul.f32 %v368, 0.015625
    %v441 = vmul.f32 %v369, 0.015625
    %v442 = vmul.f32 %v370, 0.015625
    %v443 = vmul.f32 %v371, 0.015625
    %v444 = vmul.f32 %v372, 0.015625
    %v445 = vmul.f32 %v373, 0.015625
    %v446 = vmul.f32 %v374, 0.015625
    %v447 = vmul.f32 %v375, 0.015625
    %v448 = vmul.f32 %v376, 0.015625
    %v449 = vmul.f32 %v377, 0.015625
    %v450 = vmul.f32 %v378, 0.015625
    %v451 = vmul.f32 %v379, 0.015625
    %v452 = vmul.f32 %v380, 0.015625
    %v453 = vmul.f32 %v381, 0.015625
    %v454 = vmul.f32 %v382, 0.015625
    %455 = vst [vmem:[#allocation5] sm:$0xff] %v383
    %456 = vst [vmem:[#allocation5 + $0x8] sm:$0xff] %v384
    %457 = vst [vmem:[#allocation5 + $0x10] sm:$0xff] %v385
    %458 = vst [vmem:[#allocation5 + $0x18] sm:$0xff] %v386
    %459 = vst [vmem:[#allocation5 + $0x20] sm:$0xff] %v387
    %460 = vst [vmem:[#allocation5 + $0x28] sm:$0xff] %v388
    %461 = vst [vmem:[#allocation5 + $0x30] sm:$0xff] %v389
    %462 = vst [vmem:[#allocation5 + $0x38] sm:$0xff] %v390
    %463 = vst [vmem:[#allocation5 + $0x40] sm:$0xff] %v391
    %464 = vst [vmem:[#allocation5 + $0x48] sm:$0xff] %v392
    %465 = vst [vmem:[#allocation5 + $0x50] sm:$0xff] %v393
    %466 = vst [vmem:[#allocation5 + $0x58] sm:$0xff] %v394
    %467 = vst [vmem:[#allocation5 + $0x60] sm:$0xff] %v395
    %468 = vst [vmem:[#allocation5 + $0x68] sm:$0xff] %v396
    %469 = vst [vmem:[#allocation5 + $0x70] sm:$0xff] %v397
    %470 = vst [vmem:[#allocation5 + $0x78] sm:$0xff] %v398
    %471 = vst [vmem:[#allocation5 + $0x80] sm:$0xff] %v399
    %472 = vst [vmem:[#allocation5 + $0x88] sm:$0xff] %v400
    %473 = vst [vmem:[#allocation5 + $0x90] sm:$0xff] %v401
    %474 = vst [vmem:[#allocation5 + $0x98] sm:$0xff] %v402
    %475 = vst [vmem:[#allocation5 + $0xa0] sm:$0xff] %v403
    %476 = vst [vmem:[#allocation5 + $0xa8] sm:$0xff] %v404
    %477 = vst [vmem:[#allocation5 + $0xb0] sm:$0xff] %v405
    %478 = vst [vmem:[#allocation5 + $0xb8] sm:$0xff] %v406
    %479 = vst [vmem:[#allocation5 + $0xc0] sm:$0xff] %v407
    %480 = vst [vmem:[#allocation5 + $0xc8] sm:$0xff] %v408
    %481 = vst [vmem:[#allocation5 + $0xd0] sm:$0xff] %v409
    %482 = vst [vmem:[#allocation5 + $0xd8] sm:$0xff] %v410
    %483 = vst [vmem:[#allocation5 + $0xe0] sm:$0xff] %v411
    %484 = vst [vmem:[#allocation5 + $0xe8] sm:$0xff] %v412
    %485 = vst [vmem:[#allocation5 + $0xf0] sm:$0xff] %v413
    %486 = vst [vmem:[#allocation5 + $0xf8] sm:$0xff] %v414
    %487 = vst [vmem:[#allocation5 + $0x100] sm:$0xff] %v415
    %488 = vst [vmem:[#allocation5 + $0x108] sm:$0xff] %v416
    %489 = vst [vmem:[#allocation5 + $0x110] sm:$0xff] %v417
    %490 = vst [vmem:[#allocation5 + $0x118] sm:$0xff] %v418
    %491 = vst [vmem:[#allocation5 + $0x120] sm:$0xff] %v419
    %492 = vst [vmem:[#allocation5 + $0x128] sm:$0xff] %v420
    %493 = vst [vmem:[#allocation5 + $0x130] sm:$0xff] %v421
    %494 = vst [vmem:[#allocation5 + $0x138] sm:$0xff] %v422
    %495 = vst [vmem:[#allocation5 + $0x140] sm:$0xff] %v423
    %496 = vst [vmem:[#allocation5 + $0x148] sm:$0xff] %v424
    %497 = vst [vmem:[#allocation5 + $0x150] sm:$0xff] %v425
    %498 = vst [vmem:[#allocation5 + $0x158] sm:$0xff] %v426
    %499 = vst [vmem:[#allocation5 + $0x160] sm:$0xff] %v427
    %500 = vst [vmem:[#allocation5 + $0x168] sm:$0xff] %v428
    %501 = vst [vmem:[#allocation5 + $0x170] sm:$0xff] %v429
    %502 = vst [vmem:[#allocation5 + $0x178] sm:$0xff] %v430
    %503 = vst [vmem:[#allocation5 + $0x180] sm:$0xff] %v431
    %504 = vst [vmem:[#allocation5 + $0x188] sm:$0xff] %v432
    %505 = vst [vmem:[#allocation5 + $0x190] sm:$0xff] %v433
    %506 = vst [vmem:[#allocation5 + $0x198] sm:$0xff] %v434
    %507 = vst [vmem:[#allocation5 + $0x1a0] sm:$0xff] %v435
    %508 = vst [vmem:[#allocation5 + $0x1a8] sm:$0xff] %v436
    %509 = vst [vmem:[#allocation5 + $0x1b0] sm:$0xff] %v437
    %510 = vst [vmem:[#allocation5 + $0x1b8] sm:$0xff] %v438
    %511 = vst [vmem:[#allocation5 + $0x1c0] sm:$0xff] %v439
    %512 = vst [vmem:[#allocation5 + $0x1c8] sm:$0xff] %v440
    %513 = vst [vmem:[#allocation5 + $0x1d0] sm:$0xff] %v441
    %514 = vst [vmem:[#allocation5 + $0x1d8] sm:$0xff] %v442
    %515 = vst [vmem:[#allocation5 + $0x1e0] sm:$0xff] %v443
    %516 = vst [vmem:[#allocation5 + $0x1e8] sm:$0xff] %v444
    %517 = vst [vmem:[#allocation5 + $0x1f0] sm:$0xff] %v445
    %518 = vst [vmem:[#allocation5 + $0x1f8] sm:$0xff] %v446
    %519 = vst [vmem:[#allocation5 + $0x200] sm:$0xff] %v447
    %520 = vst [vmem:[#allocation5 + $0x208] sm:$0xff] %v448
    %521 = vst [vmem:[#allocation5 + $0x210] sm:$0xff] %v449
    %522 = vst [vmem:[#allocation5 + $0x218] sm:$0xff] %v450
    %523 = vst [vmem:[#allocation5 + $0x220] sm:$0xff] %v451
    %524 = vst [vmem:[#allocation5 + $0x228] sm:$0xff] %v452
    %525 = vst [vmem:[#allocation5 + $0x230] sm:$0xff] %v453
    %526 = vst [vmem:[#allocation5 + $0x238] sm:$0xff] %v454
    // Predicated region
    $region10: #{tpu_custom_call.1} parent=1 // pred_check
      _
    $region11: #{tpu_custom_call.1} parent=1 // pred_check_branch
      %528 = sbr.rel (0) target = $region13
    $region12: #{tpu_custom_call.1} parent=1 // pred_region
      %s530 = ssub.s32 9216, 9216
      %531 = vsyncadd [#allocation4], %s530
      %s532 = sshll.u32 [#allocation5], 4
      %s533 = int_to_ptr.vmem [resolvable:$true] %s532
      %538 = dma.vmem_to_hbm [thread:$0]  %s533, 9216, %s1, [#allocation4], 128, 128, 8
    $region13: #{tpu_custom_call.1} parent=1 // pred_fallthru
      _
    // Predicated region
    $region14: #{tpu_custom_call.1} parent=1 // pred_check
      _
    $region15: #{tpu_custom_call.1} parent=1 // pred_check_branch
      %540 = sbr.rel (0) target = $region17
    $region16: #{tpu_custom_call.1} parent=1 // pred_region
      %541 = dma.done [#allocation4], 9216
    $region17: #{tpu_custom_call.1} parent=1 // pred_fallthru
      _
    %542 = vsyncpa [#allocation3], 1
    %543 = vsyncpa [#allocation4], 1

</llo_original>
